<compile_context>
chip_gen: v6e
topology: v6e:2x2x1
jax: 0.10.0
libtpu: 0.0.40
codegen_flags: <defaults>
</compile_context>

<pallas_src>
import jax
import jax.numpy as jnp
from jax.experimental import pallas as pl
from jax.experimental.pallas import tpu as pltpu

BN_EPS = 1e-5
LANE = 128          # TPU lane width: output last dim stays a multiple of this.
TN_MAX = 1024       # upper bound on the feature tile
ACC_BYTES = 4       # f32 accumulator


def _round_up(x, m):
    return ((x + m - 1) // m) * m


def _vmem_limit_bytes():
    """Scoped-VMEM limit to request: ~75% of per-core VMEM, capped at 96 MiB."""
    try:
        cap = pltpu.get_tpu_info().vmem_capacity_bytes
    except Exception:
        cap = 64 << 20  # conservative: v7x has 64 MiB per TensorCore
    return min(int(cap) * 3 // 4, 96 << 20)


def _select_tiles(N, D_in, D_out, x_bytes, w_bytes, o_bytes, budget):
    """Pick (tk, tn). tn minimises the padded feature width (then maximises tile size);
    tk == D_in (single K step) unless that cannot fit the VMEM budget."""
    dp0 = _round_up(D_out, LANE)
    tn_cap = min(TN_MAX, dp0)
    tk_cap = _round_up(D_in, LANE)

    def step_bytes(tk, tn, x_bufs):
        return (x_bufs * N * tk * x_bytes          # x tile(s)
                + 2 * tk * tn * w_bytes            # double-buffered W tile
                + 2 * N * tn * o_bytes             # double-buffered output tile
                + N * tn * ACC_BYTES               # f32 accumulator / epilogue tile
                + 2 * 2 * tn * 4)                  # gamma / beta tiles

    # 1) Whole reduction in one K step (x grid-invariant -> single VMEM buffer).
    best = None
    for tn in range(tn_cap, LANE - 1, -LANE):
        if step_bytes(D_in, tn, 1) > budget:
            continue
        key = (_round_up(D_out, tn), -tn)          # minimise padding, then maximise tn
        if best is None or key < best[0]:
            best = (key, tn)
    if best is not None:
        return D_in, best[1]

    # 2) Reduction too large for the budget: tile D_in as well (tk must be a
    #    128-multiple so the x / W block shapes stay (8,128)-aligned).
    for tn in (512, 256, 128):
        if tn > tn_cap:
            continue
        for tk in (2048, 1024, 512, 256, 128):
            if tk > tk_cap:
                continue
            if step_bytes(tk, tn, 2) <= budget:
                return tk, tn
    return 128, 128   # last resort: smallest legal tiles; may spill but compiles


def _bn_silu(y, gamma, beta):
    """Training-mode BatchNorm1d (batch stats, folded affine) + SiLU on an f32 tile."""
    inv_n = 1.0 / y.shape[0]
    mean = jnp.sum(y, axis=0, keepdims=True) * inv_n
    yc = y - mean                                       # centered: stable variance
    var = jnp.sum(yc * yc, axis=0, keepdims=True) * inv_n
    z = yc * (gamma * jax.lax.rsqrt(var + BN_EPS)) + beta
    return z * jax.nn.sigmoid(z)                        # SiLU; Dropout(p=0) == identity


def _fused_kernel(x_ref, w_ref, g_ref, b_ref, o_ref):
    # Single K step: Linear (bias cancelled by BN mean subtraction) -> BN -> SiLU.
    y = jnp.dot(x_ref[...], w_ref[...], preferred_element_type=jnp.float32)
    o_ref[...] = _bn_silu(y, g_ref[...], b_ref[...]).astype(o_ref.dtype)


def _ktiled_kernel(x_ref, w_ref, g_ref, b_ref, o_ref, acc_ref):
    k = pl.program_id(1)

    @pl.when(k == 0)
    def _():
        acc_ref[...] = jnp.zeros_like(acc_ref)

    acc_ref[...] += jnp.dot(x_ref[...], w_ref[...], preferred_element_type=jnp.float32)

    @pl.when(k == pl.num_programs(1) - 1)
    def _():
        o_ref[...] = _bn_silu(acc_ref[...], g_ref[...], b_ref[...]).astype(o_ref.dtype)


def mlp_layer(x, w, b, gamma, beta, *, keep_padded=False):
    """Forward of MLPLayer: Linear -> BatchNorm1d (train-mode batch stats) -> SiLU
    -> Dropout(p=0).

    x: (N, D_in); w: (D_in, D_out); b / gamma / beta: (D_out,).
    `b` is accepted for nn.Linear interface parity but is mathematically cancelled by
    the BatchNorm batch-mean subtraction, so it never enters the kernel.
    For small N this layer is weight-streaming / HBM-bound: callers may store/pass `w`
    in bf16 to halve weight DMA traffic (accumulation stays f32).
    Note: BatchNorm running_mean/running_var momentum updates (a training-time buffer
    side effect that does not affect this output) are not reproduced.
    """
    del b  # cancelled by training-mode BatchNorm
    N, D_in = x.shape
    D_out = w.shape[1]

    vmem_limit = _vmem_limit_bytes()
    budget = vmem_limit * 3 // 4
    tk, tn = _select_tiles(N, D_in, D_out, x.dtype.itemsize, w.dtype.itemsize,
                           x.dtype.itemsize, budget)

    Dp = _round_up(D_out, tn)                     # lane-dense, tn-aligned feature width
    Kp = D_in if tk == D_in else _round_up(D_in, tk)
    nj, nk = Dp // tn, Kp // tk

    # Zero-padding is harmless: extra K rows/cols contribute 0 to the matmul; padded
    # feature columns have gamma=0 -> scale=0 -> output exactly 0 (no rsqrt NaN).
    x_p = x if Kp == D_in else jnp.pad(x, ((0, 0), (0, Kp - D_in)))
    w_p = jnp.pad(w, ((0, Kp - D_in), (0, Dp - D_out)))
    g_p = jnp.pad(gamma.astype(jnp.float32).reshape(1, D_out), ((0, 0), (0, Dp - D_out)))
    be_p = jnp.pad(beta.astype(jnp.float32).reshape(1, D_out), ((0, 0), (0, Dp - D_out)))

    params = pltpu.CompilerParams(
        dimension_semantics=("parallel",) if nk == 1 else ("parallel", "arbitrary"),
        vmem_limit_bytes=vmem_limit,
    )
    out_shape = jax.ShapeDtypeStruct((N, Dp), x.dtype)

    if nk == 1:
        # Whole reduction in one matmul per feature tile.
        def build(x_spec):
            return pl.pallas_call(
                _fused_kernel,
                out_shape=out_shape,
                grid=(nj,),
                in_specs=[
                    x_spec,
                    pl.BlockSpec((Kp, tn), lambda j: (0, j)),
                    pl.BlockSpec((1, tn), lambda j: (0, j)),
                    pl.BlockSpec((1, tn), lambda j: (0, j)),
                ],
                out_specs=pl.BlockSpec((N, tn), lambda j: (0, j)),
                compiler_params=params,
            )

        try:
            # x's block index is constant -> a single VMEM buffer suffices
            # (halves its footprint; matters on v7x's 64 MiB/TC).
            x_spec = pl.BlockSpec((N, Kp), lambda j: (0, 0),
                                  pipeline_mode=pl.Buffered(1))
            out_p = build(x_spec)(x_p, w_p, g_p, be_p)
        except Exception:
            # Fallback: default (double-buffered) spec if Buffered(1) is rejected.
            out_p = build(pl.BlockSpec((N, Kp), lambda j: (0, 0)))(x_p, w_p, g_p, be_p)
    else:
        out_p = pl.pallas_call(
            _ktiled_kernel,
            out_shape=out_shape,
            grid=(nj, nk),                        # reduction axis innermost / last
            in_specs=[
                pl.BlockSpec((N, tk), lambda j, k: (0, k)),
                pl.BlockSpec((tk, tn), lambda j, k: (k, j)),
                pl.BlockSpec((1, tn), lambda j, k: (0, j)),
                pl.BlockSpec((1, tn), lambda j, k: (0, j)),
            ],
            out_specs=pl.BlockSpec((N, tn), lambda j, k: (0, j)),
            scratch_shapes=[pltpu.VMEM((N, tn), jnp.float32)],
            compiler_params=params,
        )(x_p, w_p, g_p, be_p)

    if keep_padded or Dp == D_out:
        return out_p                              # skip the extra HBM pass of a slice
    return out_p[:, :D_out]


if __name__ == "__main__":
    # Small shapes consistent with the module: batch=8, input_length=32, output_length=32.
    N, D_in, D_out = 8, 32, 32

    key = jax.random.PRNGKey(0)
    kx, kw, kb = jax.random.split(key, 3)

    x = jax.random.normal(kx, (N, D_in), dtype=jnp.float32)

    # nn.Linear-style uniform(-1/sqrt(fan_in), 1/sqrt(fan_in)) init.
    bound = 1.0 / (D_in ** 0.5)
    w = jax.random.uniform(kw, (D_in, D_out), minval=-bound, maxval=bound,
                           dtype=jnp.float32)
    b = jax.random.uniform(kb, (D_out,), minval=-bound, maxval=bound,
                           dtype=jnp.float32)
    # BatchNorm1d defaults: weight (gamma) = 1, bias (beta) = 0.
    gamma = jnp.ones((D_out,), dtype=jnp.float32)
    beta = jnp.zeros((D_out,), dtype=jnp.float32)

    out = mlp_layer(x, w, b, gamma, beta)
    jax.block_until_ready(out)

    # Pure-JAX reference with the bias INCLUDED, to verify the bias-cancellation and
    # the folded / centered BN math reproduce the original module semantics.
    y_ref = x @ w + b
    mu = y_ref.mean(axis=0, keepdims=True)
    var = ((y_ref - mu) ** 2).mean(axis=0, keepdims=True)
    z_ref = gamma * (y_ref - mu) / jnp.sqrt(var + BN_EPS) + beta
    ref = z_ref * jax.nn.sigmoid(z_ref)
    assert out.shape == (N, D_out)
    assert jnp.allclose(out, ref, atol=1e-4, rtol=1e-4), "mismatch vs reference"

    print("KERNEL_OK")
</pallas_src>

<mosaic_0001>
module attributes {stable_mosaic.version = 11 : i64} {
  func.func @_fused_kernel(%arg0: i32, %arg1: memref<8x32xf32, #tpu.memory_space<vmem>>, %arg2: memref<32x128xf32, #tpu.memory_space<vmem>>, %arg3: memref<1x128xf32, #tpu.memory_space<vmem>>, %arg4: memref<1x128xf32, #tpu.memory_space<vmem>>, %arg5: memref<8x128xf32, #tpu.memory_space<vmem>>) attributes {dimension_semantics = [#tpu.dimension_semantics<parallel>], iteration_bounds = array<i64: 1>, scalar_prefetch = 0 : i64, scratch_operands = 0 : i64, tpu.core_type = #tpu.core_type<tc>, window_params = [{pipeline_mode = #tpu.pipeline_mode<synchronous>, transform_indices = @transform_0, window_bounds = array<i64: 8, 32>}, {transform_indices = @transform_1, window_bounds = array<i64: 32, 128>}, {transform_indices = @transform_2, window_bounds = array<i64: 1, 128>}, {transform_indices = @transform_3, window_bounds = array<i64: 1, 128>}, {transform_indices = @transform_4, window_bounds = array<i64: 8, 128>}]} {
    %c0 = arith.constant 0 : index
    %c0_0 = arith.constant 0 : index
    %0 = vector.load %arg1[%c0, %c0_0] : memref<8x32xf32, #tpu.memory_space<vmem>>, vector<8x32xf32>
    %c0_1 = arith.constant 0 : index
    %c0_2 = arith.constant 0 : index
    %1 = vector.load %arg2[%c0_1, %c0_2] : memref<32x128xf32, #tpu.memory_space<vmem>>, vector<32x128xf32>
    %cst = arith.constant dense<0.000000e+00> : vector<8x128xf32>
    %2 = tpu.matmul %0, %1, %cst {dimension_numbers = #tpu.dot_dimension_numbers<[1], [0], [0], [1], [0, 0, 1, 1], [], []>} : vector<8x32xf32>, vector<32x128xf32>, vector<8x128xf32> -> vector<8x128xf32>
    %c0_3 = arith.constant 0 : index
    %c0_4 = arith.constant 0 : index
    %3 = vector.load %arg3[%c0_3, %c0_4] : memref<1x128xf32, #tpu.memory_space<vmem>>, vector<1x128xf32>
    %c0_5 = arith.constant 0 : index
    %c0_6 = arith.constant 0 : index
    %4 = vector.load %arg4[%c0_5, %c0_6] : memref<1x128xf32, #tpu.memory_space<vmem>>, vector<1x128xf32>
    %cst_7 = arith.constant dense<0.000000e+00> : vector<128xf32>
    %5 = vector.multi_reduction <add>, %2, %cst_7 [0] : vector<8x128xf32> to vector<128xf32>
    %6 = vector.shape_cast %5 : vector<128xf32> to vector<1x128xf32>
    %cst_8 = arith.constant 1.250000e-01 : f32
    %7 = vector.broadcast %cst_8 : f32 to vector<1x128xf32>
    %8 = arith.mulf %6, %7 : vector<1x128xf32>
    %9 = vector.broadcast %8 : vector<1x128xf32> to vector<8x128xf32>
    %10 = arith.subf %2, %9 : vector<8x128xf32>
    %11 = arith.mulf %10, %10 : vector<8x128xf32>
    %cst_9 = arith.constant dense<0.000000e+00> : vector<128xf32>
    %12 = vector.multi_reduction <add>, %11, %cst_9 [0] : vector<8x128xf32> to vector<128xf32>
    %13 = vector.shape_cast %12 : vector<128xf32> to vector<1x128xf32>
    %cst_10 = arith.constant 1.250000e-01 : f32
    %14 = vector.broadcast %cst_10 : f32 to vector<1x128xf32>
    %15 = arith.mulf %13, %14 : vector<1x128xf32>
    %cst_11 = arith.constant 9.99999974E-6 : f32
    %16 = vector.broadcast %cst_11 : f32 to vector<1x128xf32>
    %17 = arith.addf %15, %16 : vector<1x128xf32>
    %18 = math.rsqrt %17 : vector<1x128xf32>
    %19 = arith.mulf %3, %18 : vector<1x128xf32>
    %20 = vector.broadcast %19 : vector<1x128xf32> to vector<8x128xf32>
    %21 = arith.mulf %10, %20 : vector<8x128xf32>
    %22 = vector.broadcast %4 : vector<1x128xf32> to vector<8x128xf32>
    %23 = arith.addf %21, %22 : vector<8x128xf32>
    %24 = arith.negf %23 : vector<8x128xf32>
    %25 = math.exp %24 : vector<8x128xf32>
    %cst_12 = arith.constant 1.000000e+00 : f32
    %26 = vector.broadcast %cst_12 : f32 to vector<8x128xf32>
    %27 = arith.addf %26, %25 : vector<8x128xf32>
    %28 = arith.divf %26, %27 : vector<8x128xf32>
    %29 = arith.mulf %23, %28 : vector<8x128xf32>
    %c0_13 = arith.constant 0 : index
    %c0_14 = arith.constant 0 : index
    %30 = vector.load %arg5[%c0_13, %c0_14] : memref<8x128xf32, #tpu.memory_space<vmem>>, vector<8x128xf32>
    tpu.vector_store %arg5[%c0_13, %c0_14], %29 {strides = array<i32>} : memref<8x128xf32, #tpu.memory_space<vmem>>, vector<8x128xf32>,
    return
  }
  func.func @transform_0(%arg0: i32) -> (i32, i32) {
    %c0_i32 = arith.constant 0 : i32
    %c0_i32_0 = arith.constant 0 : i32
    %c0_i32_1 = arith.constant 0 : i32
    return %c0_i32, %c0_i32_0 : i32, i32
  }
  func.func @transform_1(%arg0: i32) -> (i32, i32) {
    %c0_i32 = arith.constant 0 : i32
    %c0_i32_0 = arith.constant 0 : i32
    return %c0_i32, %arg0 : i32, i32
  }
  func.func @transform_2(%arg0: i32) -> (i32, i32) {
    %c0_i32 = arith.constant 0 : i32
    %c0_i32_0 = arith.constant 0 : i32
    return %c0_i32, %arg0 : i32, i32
  }
  func.func @transform_3(%arg0: i32) -> (i32, i32) {
    %c0_i32 = arith.constant 0 : i32
    %c0_i32_0 = arith.constant 0 : i32
    return %c0_i32, %arg0 : i32, i32
  }
  func.func @transform_4(%arg0: i32) -> (i32, i32) {
    %c0_i32 = arith.constant 0 : i32
    %c0_i32_0 = arith.constant 0 : i32
    return %c0_i32, %arg0 : i32, i32
  }
}

module attributes {stable_mosaic.version = 11 : i64} {
  func.func @_fused_kernel(%arg0: i32, %arg1: memref<8x32xf32, #tpu.memory_space<vmem>>, %arg2: memref<32x128xf32, #tpu.memory_space<vmem>>, %arg3: memref<1x128xf32, #tpu.memory_space<vmem>>, %arg4: memref<1x128xf32, #tpu.memory_space<vmem>>, %arg5: memref<8x128xf32, #tpu.memory_space<vmem>>) attributes {dimension_semantics = [#tpu.dimension_semantics<parallel>], iteration_bounds = array<i64: 1>, scalar_prefetch = 0 : i64, scratch_operands = 0 : i64, tpu.core_type = #tpu.core_type<tc>, window_params = [{pipeline_mode = #tpu.pipeline_mode<synchronous>, transform_indices = @transform_0, window_bounds = array<i64: 8, 32>}, {transform_indices = @transform_1, window_bounds = array<i64: 32, 128>}, {transform_indices = @transform_2, window_bounds = array<i64: 1, 128>}, {transform_indices = @transform_3, window_bounds = array<i64: 1, 128>}, {transform_indices = @transform_4, window_bounds = array<i64: 8, 128>}]} {
    %c0 = arith.constant 0 : index
    %c0_0 = arith.constant 0 : index
    %0 = vector.load %arg1[%c0, %c0_0] : memref<8x32xf32, #tpu.memory_space<vmem>>, vector<8x32xf32>
    %c0_1 = arith.constant 0 : index
    %c0_2 = arith.constant 0 : index
    %1 = vector.load %arg2[%c0_1, %c0_2] : memref<32x128xf32, #tpu.memory_space<vmem>>, vector<32x128xf32>
    %cst = arith.constant dense<0.000000e+00> : vector<8x128xf32>
    %2 = tpu.matmul %0, %1, %cst {dimension_numbers = #tpu.dot_dimension_numbers<[1], [0], [0], [1], [0, 0, 1, 1], [], []>} : vector<8x32xf32>, vector<32x128xf32>, vector<8x128xf32> -> vector<8x128xf32>
    %c0_3 = arith.constant 0 : index
    %c0_4 = arith.constant 0 : index
    %3 = vector.load %arg3[%c0_3, %c0_4] : memref<1x128xf32, #tpu.memory_space<vmem>>, vector<1x128xf32>
    %c0_5 = arith.constant 0 : index
    %c0_6 = arith.constant 0 : index
    %4 = vector.load %arg4[%c0_5, %c0_6] : memref<1x128xf32, #tpu.memory_space<vmem>>, vector<1x128xf32>
    %cst_7 = arith.constant dense<0.000000e+00> : vector<128xf32>
    %5 = vector.multi_reduction <add>, %2, %cst_7 [0] : vector<8x128xf32> to vector<128xf32>
    %6 = vector.shape_cast %5 : vector<128xf32> to vector<1x128xf32>
    %cst_8 = arith.constant 1.250000e-01 : f32
    %7 = vector.broadcast %cst_8 : f32 to vector<1x128xf32>
    %8 = arith.mulf %6, %7 : vector<1x128xf32>
    %9 = vector.broadcast %8 : vector<1x128xf32> to vector<8x128xf32>
    %10 = arith.subf %2, %9 : vector<8x128xf32>
    %11 = arith.mulf %10, %10 : vector<8x128xf32>
    %cst_9 = arith.constant dense<0.000000e+00> : vector<128xf32>
    %12 = vector.multi_reduction <add>, %11, %cst_9 [0] : vector<8x128xf32> to vector<128xf32>
    %13 = vector.shape_cast %12 : vector<128xf32> to vector<1x128xf32>
    %cst_10 = arith.constant 1.250000e-01 : f32
    %14 = vector.broadcast %cst_10 : f32 to vector<1x128xf32>
    %15 = arith.mulf %13, %14 : vector<1x128xf32>
    %cst_11 = arith.constant 9.99999974E-6 : f32
    %16 = vector.broadcast %cst_11 : f32 to vector<1x128xf32>
    %17 = arith.addf %15, %16 : vector<1x128xf32>
    %18 = math.rsqrt %17 : vector<1x128xf32>
    %19 = arith.mulf %3, %18 : vector<1x128xf32>
    %20 = vector.broadcast %19 : vector<1x128xf32> to vector<8x128xf32>
    %21 = arith.mulf %10, %20 : vector<8x128xf32>
    %22 = vector.broadcast %4 : vector<1x128xf32> to vector<8x128xf32>
    %23 = arith.addf %21, %22 : vector<8x128xf32>
    %24 = arith.negf %23 : vector<8x128xf32>
    %25 = math.exp %24 : vector<8x128xf32>
    %cst_12 = arith.constant 1.000000e+00 : f32
    %26 = vector.broadcast %cst_12 : f32 to vector<8x128xf32>
    %27 = arith.addf %26, %25 : vector<8x128xf32>
    %28 = arith.divf %26, %27 : vector<8x128xf32>
    %29 = arith.mulf %23, %28 : vector<8x128xf32>
    %c0_13 = arith.constant 0 : index
    %c0_14 = arith.constant 0 : index
    %30 = vector.load %arg5[%c0_13, %c0_14] : memref<8x128xf32, #tpu.memory_space<vmem>>, vector<8x128xf32>
    tpu.vector_store %arg5[%c0_13, %c0_14], %29 {strides = array<i32>} : memref<8x128xf32, #tpu.memory_space<vmem>>, vector<8x128xf32>,
    return
  }
  func.func @transform_0(%arg0: i32) -> (i32, i32) {
    %c0_i32 = arith.constant 0 : i32
    %c0_i32_0 = arith.constant 0 : i32
    %c0_i32_1 = arith.constant 0 : i32
    return %c0_i32, %c0_i32_0 : i32, i32
  }
  func.func @transform_1(%arg0: i32) -> (i32, i32) {
    %c0_i32 = arith.constant 0 : i32
    %c0_i32_0 = arith.constant 0 : i32
    return %c0_i32, %arg0 : i32, i32
  }
  func.func @transform_2(%arg0: i32) -> (i32, i32) {
    %c0_i32 = arith.constant 0 : i32
    %c0_i32_0 = arith.constant 0 : i32
    return %c0_i32, %arg0 : i32, i32
  }
  func.func @transform_3(%arg0: i32) -> (i32, i32) {
    %c0_i32 = arith.constant 0 : i32
    %c0_i32_0 = arith.constant 0 : i32
    return %c0_i32, %arg0 : i32, i32
  }
  func.func @transform_4(%arg0: i32) -> (i32, i32) {
    %c0_i32 = arith.constant 0 : i32
    %c0_i32_0 = arith.constant 0 : i32
    return %c0_i32, %arg0 : i32, i32
  }
}

</mosaic_0001>

<llo_original>
// kernel: tpu_custom_call.1
$region0: #{tpu_custom_call.1}
  #allocation0 [shape = 'u32[]', space=smem, size = 0x4, offset = 0x4, fixed_abs, tag = 'smem constant byte address 0x4 - core index']
  #allocation1 [shape = 'u32[144,128]{1,0:T(1,128)}', space=vmem, size = 0x12000, scoped, tag = 'internal scratch']
  %s0 = inlined_call_operand.hbm [shape: f32[8,32], index: 0, kind: input, shape index: {}]
  %s1 = inlined_call_operand.hbm [shape: f32[32,128], index: 1, kind: input, shape index: {}]
  %s2 = inlined_call_operand.vmem [shape: f32[1,128], index: 2, kind: input, shape index: {}]
  %s3 = inlined_call_operand.vmem [shape: f32[1,128], index: 3, kind: input, shape index: {}]
  %s4 = inlined_call_operand.hbm [shape: f32[8,128], index: 4, kind: output, shape index: {}]
  %s5 = sld [smem:[#allocation0]]
  $region34: #{tpu_custom_call.1} parent=0
    _
  %s7 = ssub.s32 1, %s5
  %s8 = scalar_select 0, %s7, %s5
  $region1: #{tpu_custom_call.1} parent=0
    #allocation2 [shape = 'u8[4096]{0}', space=vmem, size = 0x1000, scoped, tag = 'input window, operand 0, single buffered']
    #allocation3 [shape = 's32[1]{0}', space=sflag, size = 0x4, scoped, tag = 'scoped memory for tpu_custom_call.1']
    #allocation4 [shape = 's32[1]{0}', space=sflag, size = 0x4, scoped, tag = 'scoped memory for tpu_custom_call.1']
    #allocation5 [shape = 'u8[16384]{0}', space=vmem, size = 0x4000, scoped, tag = 'input window, operand 1, single buffered']
    #allocation6 [shape = 's32[1]{0}', space=sflag, size = 0x4, scoped, tag = 'scoped memory for tpu_custom_call.1']
    #allocation7 [shape = 'u8[4096]{0}', space=vmem, size = 0x1000, scoped, tag = 'output window, operand 0, single buffered']
    %9 = vsyncpa [#allocation3], 0
    %10 = vsyncpa [#allocation6], 0
    %11 = vsyncpa [#allocation4], 0
    // Predicated region
    $region2: #{tpu_custom_call.1} parent=1 // pred_check
      _
    $region3: #{tpu_custom_call.1} parent=1 // pred_check_branch
      %13 = sbr.rel (0) target = $region5
    $region4: #{tpu_custom_call.1} parent=1 // pred_region
      %s15 = ssub.s32 128, 128
      %16 = vsyncadd [#allocation3], %s15
      %s18 = sshll.u32 [#allocation2], 4
      %s19 = int_to_ptr.vmem [resolvable:$true] %s18
      %21 = dma.hbm_to_vmem [thread:$0]  %s0, 128, %s19, [#allocation3]
    $region5: #{tpu_custom_call.1} parent=1 // pred_fallthru
      _
    // Predicated region
    $region6: #{tpu_custom_call.1} parent=1 // pred_check
      _
    $region7: #{tpu_custom_call.1} parent=1 // pred_check_branch
      %23 = sbr.rel (0) target = $region9
    $region8: #{tpu_custom_call.1} parent=1 // pred_region
      %s25 = ssub.s32 512, 512
      %26 = vsyncadd [#allocation6], %s25
      %s27 = sshll.u32 [#allocation5], 4
      %s28 = int_to_ptr.vmem [resolvable:$true] %s27
      %33 = dma.hbm_to_vmem [thread:$0]  %s1, 512, %s28, [#allocation6], 128, 128, 8
    $region9: #{tpu_custom_call.1} parent=1 // pred_fallthru
      _
    // Predicated region
    $region10: #{tpu_custom_call.1} parent=1 // pred_check
      _
    $region11: #{tpu_custom_call.1} parent=1 // pred_check_branch
      %35 = sbr.rel (0) target = $region13
    $region12: #{tpu_custom_call.1} parent=1 // pred_region
      _
    $region13: #{tpu_custom_call.1} parent=1 // pred_fallthru
      _
    // Predicated region
    $region14: #{tpu_custom_call.1} parent=1 // pred_check
      _
    $region15: #{tpu_custom_call.1} parent=1 // pred_check_branch
      %37 = sbr.rel (0) target = $region17
    $region16: #{tpu_custom_call.1} parent=1 // pred_region
      _
    $region17: #{tpu_custom_call.1} parent=1 // pred_fallthru
      _
    // Predicated region
    $region18: #{tpu_custom_call.1} parent=1 // pred_check
      _
    $region19: #{tpu_custom_call.1} parent=1 // pred_check_branch
      %39 = sbr.rel (0) target = $region21
    $region20: #{tpu_custom_call.1} parent=1 // pred_region
      %40 = dma.done [#allocation3], 128
    $region21: #{tpu_custom_call.1} parent=1 // pred_fallthru
      _
    // Predicated region
    $region22: #{tpu_custom_call.1} parent=1 // pred_check
      _
    $region23: #{tpu_custom_call.1} parent=1 // pred_check_branch
      %42 = sbr.rel (0) target = $region25
    $region24: #{tpu_custom_call.1} parent=1 // pred_region
      %43 = dma.done [#allocation6], 512
    $region25: #{tpu_custom_call.1} parent=1 // pred_fallthru
      _
    %v44 = vld [vmem:[#allocation2] sm:$0xff]
    %v45 = vld [vmem:[#allocation5] sm:$0xff]
    %v46 = vld [vmem:[#allocation5 + $0x8] sm:$0xff]
    %v47 = vld [vmem:[#allocation5 + $0x10] sm:$0xff]
    %v48 = vld [vmem:[#allocation5 + $0x18] sm:$0xff]
    %vm49 = vcmask 261120
    %v51 = vsel %vm49, %v44, 0
    %53 = vmatprep.subr.mxu0 0.0
    %54 = vmatpush1.msra.mxu0 0.0
    %55 = vmatprep.subr.mxu0 0.0
    %56 = vmatpush1.msra.mxu0 0.0
    %57 = vmatprep.subr.mxu0 0.0
    %58 = vmatpush1.msra.mxu0 0.0
    %59 = vmatprep.subr.mxu0 0.0
    %60 = vmatpush1.msra.mxu0 0.0
    %61 = vmatprep.subr.mxu0 0.0
    %62 = vmatpush1.msra.mxu0 0.0
    %63 = vmatprep.subr.mxu0 0.0
    %64 = vmatpush1.msra.mxu0 0.0
    %65 = vmatprep.subr.mxu0 0.0
    %66 = vmatpush1.msra.mxu0 0.0
    %67 = vmatprep.subr.mxu0 0.0
    %68 = vmatpush1.msra.mxu0 0.0
    %69 = vmatprep.subr.mxu0 0.0
    %70 = vmatpush1.msra.mxu0 0.0
    %71 = vmatprep.subr.mxu0 0.0
    %72 = vmatpush1.msra.mxu0 0.0
    %73 = vmatprep.subr.mxu0 0.0
    %74 = vmatpush1.msra.mxu0 0.0
    %75 = vmatprep.subr.mxu0 0.0
    %76 = vmatpush1.msra.mxu0 0.0
    %77 = vmatprep.subr.mxu0 0.0
    %78 = vmatpush1.msra.mxu0 %v48
    %79 = vmatprep.subr.mxu0 0.0
    %80 = vmatpush1.msra.mxu0 %v47
    %81 = vmatprep.subr.mxu0 0.0
    %82 = vmatpush1.msra.mxu0 %v46
    %83 = vmatprep.subr.mxu0 0.0
    %84 = vmatpush1.msra.mxu0 %v45
    %85 = vmatprep.subr.mxu0 0.0
    %86 = vmatpush2.msra.mxu0 0.0
    %87 = vmatprep.subr.mxu0 0.0
    %88 = vmatpush2.msra.mxu0 0.0
    %89 = vmatprep.subr.mxu0 0.0
    %90 = vmatpush2.msra.mxu0 0.0
    %91 = vmatprep.subr.mxu0 0.0
    %92 = vmatpush2.msra.mxu0 0.0
    %93 = vmatprep.subr.mxu0 0.0
    %94 = vmatpush2.msra.mxu0 0.0
    %95 = vmatprep.subr.mxu0 0.0
    %96 = vmatpush2.msra.mxu0 0.0
    %97 = vmatprep.subr.mxu0 0.0
    %98 = vmatpush2.msra.mxu0 0.0
    %99 = vmatprep.subr.mxu0 0.0
    %100 = vmatpush2.msra.mxu0 0.0
    %101 = vmatprep.subr.mxu0 0.0
    %102 = vmatpush2.msra.mxu0 0.0
    %103 = vmatprep.subr.mxu0 0.0
    %104 = vmatpush2.msra.mxu0 0.0
    %105 = vmatprep.subr.mxu0 0.0
    %106 = vmatpush2.msra.mxu0 0.0
    %107 = vmatprep.subr.mxu0 0.0
    %108 = vmatpush2.msra.mxu0 0.0
    %109 = vmatprep.subr.mxu0 0.0
    %110 = vmatpush2.msra.mxu0 0.0
    %111 = vmatprep.subr.mxu0 0.0
    %112 = vmatpush2.msra.mxu0 0.0
    %113 = vmatprep.subr.mxu0 0.0
    %114 = vmatpush2.msra.mxu0 0.0
    %115 = vmatprep.subr.mxu0 0.0
    %116 = vmatpush2.msra.mxu0 0.0
    %117 = vmatprep.mubr.f32.mxu0 0.0
    %118 = vmatmul.mubr.f32.gmra.mxu0 %v51
    %v119 = vpop.f32.mrf.mxu0
    %v120 = vadd.f32 0.0, %v119
    %v121 = vpop.f32.mrf.mxu0
    %122 = vdwg.mxu0
    %v123 = vld [vmem:[%s2] sm:$0x1]
    %v124 = vld [vmem:[%s3] sm:$0x1]
    %v125 = vrot.slane %v120, 4
    %v126 = vadd.f32 %v120, %v125
    %v127 = vrot.slane %v126, 2
    %v128 = vadd.f32 %v126, %v127
    %v129 = vrot.slane %v128, 1
    %v130 = vadd.f32 %v128, %v129
    %v131 = vmul.f32 %v130, 0.125
    %v132 = vsub.f32 %v120, %v131
    %v133 = vmul.f32 %v132, %v132
    %v134 = vrot.slane %v133, 4
    %v135 = vadd.f32 %v133, %v134
    %v136 = vrot.slane %v135, 2
    %v137 = vadd.f32 %v135, %v136
    %v138 = vrot.slane %v137, 1
    %v139 = vadd.f32 %v137, %v138
    %v140 = vmul.f32 %v139, 0.125
    %v141 = vadd.f32 %v140, 1e-05
    %v142 = vrsqrt.pop %v141
    %v143 = vmul.f32 %v123, %v142
    %v145 = vlaneseq
    %v146 = vshrl.u32 %v145, 7
    %v147 = vsub.s32 0, %v146
    %v148 = vrot.slane %v143, %v147
    %v150 = vmul.f32 %v132, %v148
    %v152 = vlaneseq
    %v153 = vshrl.u32 %v152, 7
    %v154 = vsub.s32 0, %v153
    %v155 = vrot.slane %v124, %v154
    %v157 = vadd.f32 %v150, %v155
    %v158 = vxor.u32 %v157, 2147483648
    %v159 = vmul.f32 %v158, 1.442695
    %v160 = vpow.pop %v159
    %v161 = vadd.f32 %v160, 1.0
    %v162 = vrcp.pop %v161
    %v163 = vmul.f32 1.0, %v162
    %v164 = vmul.f32 %v157, %v163
    %165 = vst [vmem:[#allocation7] sm:$0xff] %v164
    // Predicated region
    $region26: #{tpu_custom_call.1} parent=1 // pred_check
      _
    $region27: #{tpu_custom_call.1} parent=1 // pred_check_branch
      %167 = sbr.rel (0) target = $region29
    $region28: #{tpu_custom_call.1} parent=1 // pred_region
      %s169 = ssub.s32 128, 128
      %170 = vsyncadd [#allocation4], %s169
      %s172 = sshll.u32 [#allocation7], 4
      %s173 = int_to_ptr.vmem [resolvable:$true] %s172
      %175 = dma.vmem_to_hbm [thread:$0]  %s173, 128, %s4, [#allocation4]
    $region29: #{tpu_custom_call.1} parent=1 // pred_fallthru
      _
    // Predicated region
    $region30: #{tpu_custom_call.1} parent=1 // pred_check
      _
    $region31: #{tpu_custom_call.1} parent=1 // pred_check_branch
      %177 = sbr.rel (0) target = $region33
    $region32: #{tpu_custom_call.1} parent=1 // pred_region
      %178 = dma.done [#allocation4], 128
    $region33: #{tpu_custom_call.1} parent=1 // pred_fallthru
      _
    %179 = vsyncpa [#allocation3], 1
    %180 = vsyncpa [#allocation6], 1
    %181 = vsyncpa [#allocation4], 1

// kernel: tpu_custom_call.1
$region0: #{tpu_custom_call.1}
  #allocation0 [shape = 'u32[]', space=smem, size = 0x4, offset = 0x4, fixed_abs, tag = 'smem constant byte address 0x4 - core index']
  #allocation1 [shape = 'u32[144,128]{1,0:T(1,128)}', space=vmem, size = 0x12000, scoped, tag = 'internal scratch']
  %s0 = inlined_call_operand.hbm [shape: f32[8,32], index: 0, kind: input, shape index: {}]
  %s1 = inlined_call_operand.hbm [shape: f32[32,128], index: 1, kind: input, shape index: {}]
  %s2 = inlined_call_operand.vmem [shape: f32[1,128], index: 2, kind: input, shape index: {}]
  %s3 = inlined_call_operand.vmem [shape: f32[1,128], index: 3, kind: input, shape index: {}]
  %s4 = inlined_call_operand.hbm [shape: f32[8,128], index: 4, kind: output, shape index: {}]
  %s5 = sld [smem:[#allocation0]]
  $region34: #{tpu_custom_call.1} parent=0
    _
  %s7 = ssub.s32 1, %s5
  %s8 = scalar_select 0, %s7, %s5
  $region1: #{tpu_custom_call.1} parent=0
    #allocation2 [shape = 'u8[4096]{0}', space=vmem, size = 0x1000, scoped, tag = 'input window, operand 0, single buffered']
    #allocation3 [shape = 's32[1]{0}', space=sflag, size = 0x4, scoped, tag = 'scoped memory for tpu_custom_call.1']
    #allocation4 [shape = 's32[1]{0}', space=sflag, size = 0x4, scoped, tag = 'scoped memory for tpu_custom_call.1']
    #allocation5 [shape = 'u8[16384]{0}', space=vmem, size = 0x4000, scoped, tag = 'input window, operand 1, single buffered']
    #allocation6 [shape = 's32[1]{0}', space=sflag, size = 0x4, scoped, tag = 'scoped memory for tpu_custom_call.1']
    #allocation7 [shape = 'u8[4096]{0}', space=vmem, size = 0x1000, scoped, tag = 'output window, operand 0, single buffered']
    %9 = vsyncpa [#allocation3], 0
    %10 = vsyncpa [#allocation6], 0
    %11 = vsyncpa [#allocation4], 0
    // Predicated region
    $region2: #{tpu_custom_call.1} parent=1 // pred_check
      _
    $region3: #{tpu_custom_call.1} parent=1 // pred_check_branch
      %13 = sbr.rel (0) target = $region5
    $region4: #{tpu_custom_call.1} parent=1 // pred_region
      %s15 = ssub.s32 128, 128
      %16 = vsyncadd [#allocation3], %s15
      %s18 = sshll.u32 [#allocation2], 4
      %s19 = int_to_ptr.vmem [resolvable:$true] %s18
      %21 = dma.hbm_to_vmem [thread:$0]  %s0, 128, %s19, [#allocation3]
    $region5: #{tpu_custom_call.1} parent=1 // pred_fallthru
      _
    // Predicated region
    $region6: #{tpu_custom_call.1} parent=1 // pred_check
      _
    $region7: #{tpu_custom_call.1} parent=1 // pred_check_branch
      %23 = sbr.rel (0) target = $region9
    $region8: #{tpu_custom_call.1} parent=1 // pred_region
      %s25 = ssub.s32 512, 512
      %26 = vsyncadd [#allocation6], %s25
      %s27 = sshll.u32 [#allocation5], 4
      %s28 = int_to_ptr.vmem [resolvable:$true] %s27
      %33 = dma.hbm_to_vmem [thread:$0]  %s1, 512, %s28, [#allocation6], 128, 128, 8
    $region9: #{tpu_custom_call.1} parent=1 // pred_fallthru
      _
    // Predicated region
    $region10: #{tpu_custom_call.1} parent=1 // pred_check
      _
    $region11: #{tpu_custom_call.1} parent=1 // pred_check_branch
      %35 = sbr.rel (0) target = $region13
    $region12: #{tpu_custom_call.1} parent=1 // pred_region
      _
    $region13: #{tpu_custom_call.1} parent=1 // pred_fallthru
      _
    // Predicated region
    $region14: #{tpu_custom_call.1} parent=1 // pred_check
      _
    $region15: #{tpu_custom_call.1} parent=1 // pred_check_branch
      %37 = sbr.rel (0) target = $region17
    $region16: #{tpu_custom_call.1} parent=1 // pred_region
      _
    $region17: #{tpu_custom_call.1} parent=1 // pred_fallthru
      _
    // Predicated region
    $region18: #{tpu_custom_call.1} parent=1 // pred_check
      _
    $region19: #{tpu_custom_call.1} parent=1 // pred_check_branch
      %39 = sbr.rel (0) target = $region21
    $region20: #{tpu_custom_call.1} parent=1 // pred_region
      %40 = dma.done [#allocation3], 128
    $region21: #{tpu_custom_call.1} parent=1 // pred_fallthru
      _
    // Predicated region
    $region22: #{tpu_custom_call.1} parent=1 // pred_check
      _
    $region23: #{tpu_custom_call.1} parent=1 // pred_check_branch
      %42 = sbr.rel (0) target = $region25
    $region24: #{tpu_custom_call.1} parent=1 // pred_region
      %43 = dma.done [#allocation6], 512
    $region25: #{tpu_custom_call.1} parent=1 // pred_fallthru
      _
    %v44 = vld [vmem:[#allocation2] sm:$0xff]
    %v45 = vld [vmem:[#allocation5] sm:$0xff]
    %v46 = vld [vmem:[#allocation5 + $0x8] sm:$0xff]
    %v47 = vld [vmem:[#allocation5 + $0x10] sm:$0xff]
    %v48 = vld [vmem:[#allocation5 + $0x18] sm:$0xff]
    %vm49 = vcmask 261120
    %v51 = vsel %vm49, %v44, 0
    %53 = vmatprep.subr.mxu0 0.0
    %54 = vmatpush1.msra.mxu0 0.0
    %55 = vmatprep.subr.mxu0 0.0
    %56 = vmatpush1.msra.mxu0 0.0
    %57 = vmatprep.subr.mxu0 0.0
    %58 = vmatpush1.msra.mxu0 0.0
    %59 = vmatprep.subr.mxu0 0.0
    %60 = vmatpush1.msra.mxu0 0.0
    %61 = vmatprep.subr.mxu0 0.0
    %62 = vmatpush1.msra.mxu0 0.0
    %63 = vmatprep.subr.mxu0 0.0
    %64 = vmatpush1.msra.mxu0 0.0
    %65 = vmatprep.subr.mxu0 0.0
    %66 = vmatpush1.msra.mxu0 0.0
    %67 = vmatprep.subr.mxu0 0.0
    %68 = vmatpush1.msra.mxu0 0.0
    %69 = vmatprep.subr.mxu0 0.0
    %70 = vmatpush1.msra.mxu0 0.0
    %71 = vmatprep.subr.mxu0 0.0
    %72 = vmatpush1.msra.mxu0 0.0
    %73 = vmatprep.subr.mxu0 0.0
    %74 = vmatpush1.msra.mxu0 0.0
    %75 = vmatprep.subr.mxu0 0.0
    %76 = vmatpush1.msra.mxu0 0.0
    %77 = vmatprep.subr.mxu0 0.0
    %78 = vmatpush1.msra.mxu0 %v48
    %79 = vmatprep.subr.mxu0 0.0
    %80 = vmatpush1.msra.mxu0 %v47
    %81 = vmatprep.subr.mxu0 0.0
    %82 = vmatpush1.msra.mxu0 %v46
    %83 = vmatprep.subr.mxu0 0.0
    %84 = vmatpush1.msra.mxu0 %v45
    %85 = vmatprep.subr.mxu0 0.0
    %86 = vmatpush2.msra.mxu0 0.0
    %87 = vmatprep.subr.mxu0 0.0
    %88 = vmatpush2.msra.mxu0 0.0
    %89 = vmatprep.subr.mxu0 0.0
    %90 = vmatpush2.msra.mxu0 0.0
    %91 = vmatprep.subr.mxu0 0.0
    %92 = vmatpush2.msra.mxu0 0.0
    %93 = vmatprep.subr.mxu0 0.0
    %94 = vmatpush2.msra.mxu0 0.0
    %95 = vmatprep.subr.mxu0 0.0
    %96 = vmatpush2.msra.mxu0 0.0
    %97 = vmatprep.subr.mxu0 0.0
    %98 = vmatpush2.msra.mxu0 0.0
    %99 = vmatprep.subr.mxu0 0.0
    %100 = vmatpush2.msra.mxu0 0.0
    %101 = vmatprep.subr.mxu0 0.0
    %102 = vmatpush2.msra.mxu0 0.0
    %103 = vmatprep.subr.mxu0 0.0
    %104 = vmatpush2.msra.mxu0 0.0
    %105 = vmatprep.subr.mxu0 0.0
    %106 = vmatpush2.msra.mxu0 0.0
    %107 = vmatprep.subr.mxu0 0.0
    %108 = vmatpush2.msra.mxu0 0.0
    %109 = vmatprep.subr.mxu0 0.0
    %110 = vmatpush2.msra.mxu0 0.0
    %111 = vmatprep.subr.mxu0 0.0
    %112 = vmatpush2.msra.mxu0 0.0
    %113 = vmatprep.subr.mxu0 0.0
    %114 = vmatpush2.msra.mxu0 0.0
    %115 = vmatprep.subr.mxu0 0.0
    %116 = vmatpush2.msra.mxu0 0.0
    %117 = vmatprep.mubr.f32.mxu0 0.0
    %118 = vmatmul.mubr.f32.gmra.mxu0 %v51
    %v119 = vpop.f32.mrf.mxu0
    %v120 = vadd.f32 0.0, %v119
    %v121 = vpop.f32.mrf.mxu0
    %122 = vdwg.mxu0
    %v123 = vld [vmem:[%s2] sm:$0x1]
    %v124 = vld [vmem:[%s3] sm:$0x1]
    %v125 = vrot.slane %v120, 4
    %v126 = vadd.f32 %v120, %v125
    %v127 = vrot.slane %v126, 2
    %v128 = vadd.f32 %v126, %v127
    %v129 = vrot.slane %v128, 1
    %v130 = vadd.f32 %v128, %v129
    %v131 = vmul.f32 %v130, 0.125
    %v132 = vsub.f32 %v120, %v131
    %v133 = vmul.f32 %v132, %v132
    %v134 = vrot.slane %v133, 4
    %v135 = vadd.f32 %v133, %v134
    %v136 = vrot.slane %v135, 2
    %v137 = vadd.f32 %v135, %v136
    %v138 = vrot.slane %v137, 1
    %v139 = vadd.f32 %v137, %v138
    %v140 = vmul.f32 %v139, 0.125
    %v141 = vadd.f32 %v140, 1e-05
    %v142 = vrsqrt.pop %v141
    %v143 = vmul.f32 %v123, %v142
    %v145 = vlaneseq
    %v146 = vshrl.u32 %v145, 7
    %v147 = vsub.s32 0, %v146
    %v148 = vrot.slane %v143, %v147
    %v150 = vmul.f32 %v132, %v148
    %v152 = vlaneseq
    %v153 = vshrl.u32 %v152, 7
    %v154 = vsub.s32 0, %v153
    %v155 = vrot.slane %v124, %v154
    %v157 = vadd.f32 %v150, %v155
    %v158 = vxor.u32 %v157, 2147483648
    %v159 = vmul.f32 %v158, 1.442695
    %v160 = vpow.pop %v159
    %v161 = vadd.f32 %v160, 1.0
    %v162 = vrcp.pop %v161
    %v163 = vmul.f32 1.0, %v162
    %v164 = vmul.f32 %v157, %v163
    %165 = vst [vmem:[#allocation7] sm:$0xff] %v164
    // Predicated region
    $region26: #{tpu_custom_call.1} parent=1 // pred_check
      _
    $region27: #{tpu_custom_call.1} parent=1 // pred_check_branch
      %167 = sbr.rel (0) target = $region29
    $region28: #{tpu_custom_call.1} parent=1 // pred_region
      %s169 = ssub.s32 128, 128
      %170 = vsyncadd [#allocation4], %s169
      %s172 = sshll.u32 [#allocation7], 4
      %s173 = int_to_ptr.vmem [resolvable:$true] %s172
      %175 = dma.vmem_to_hbm [thread:$0]  %s173, 128, %s4, [#allocation4]
    $region29: #{tpu_custom_call.1} parent=1 // pred_fallthru
      _
    // Predicated region
    $region30: #{tpu_custom_call.1} parent=1 // pred_check
      _
    $region31: #{tpu_custom_call.1} parent=1 // pred_check_branch
      %177 = sbr.rel (0) target = $region33
    $region32: #{tpu_custom_call.1} parent=1 // pred_region
      %178 = dma.done [#allocation4], 128
    $region33: #{tpu_custom_call.1} parent=1 // pred_fallthru
      _
    %179 = vsyncpa [#allocation3], 1
    %180 = vsyncpa [#allocation6], 1
    %181 = vsyncpa [#allocation4], 1

</llo_original>
